<compile_context>
chip_gen: v6e
topology: v6e:2x2x1
jax: 0.10.0
libtpu: 0.0.40
codegen_flags: <defaults>
</compile_context>

<pallas_src>
import functools

import jax
import jax.numpy as jnp
from jax.experimental import pallas as pl
from jax.experimental.pallas import tpu as pltpu

SCALE = 0.09
EPS = 1e-6

# Tile preferences (safe on v5e/v6e/v7x): double-buffered f32 inputs cost
# 2*(tm*tk + tn*tk)*4B + tm*tn*4B accumulator ~= 2.3 MiB at 256/256/512.
_TM_PREF = 256
_TN_PREF = 256
_TK_PREF = 512


def _round_up(v, m):
    return ((v + m - 1) // m) * m


def _cos_linear_kernel(x_ref, w_ref, inv_wn_ref, o_ref, acc_ref, xsq_ref,
                       *, use_bf16):
    k = pl.program_id(2)

    @pl.when(k == 0)
    def _init():
        acc_ref[...] = jnp.zeros_like(acc_ref)
        xsq_ref[...] = jnp.zeros_like(xsq_ref)

    x = x_ref[...]
    w = w_ref[...]

    # x-row sum-of-squares partial, accumulated over the K grid axis
    # (always f32; hides under the MXU slot).
    xf = x.astype(jnp.float32)
    xsq_ref[...] += jnp.sum(xf * xf, axis=1, keepdims=True)

    if use_bf16:
        # Optional bandwidth/precision tradeoff (off by default to match the
        # fp32 torch reference); accumulation stays f32.
        x = x.astype(jnp.bfloat16)
        w = w.astype(jnp.bfloat16)

    # Contract dim 1 (K) of both operands: W is [N, K], so the MXU is fed
    # directly with no transpose / data movement.
    acc_ref[...] += jax.lax.dot_general(
        x, w,
        dimension_numbers=(((1,), (1,)), ((), ())),
        preferred_element_type=jnp.float32,
    )

    @pl.when(k == pl.num_programs(2) - 1)
    def _finalize():
        # 1 / (||x_row|| + eps); the 1/SCALE constant is already folded into
        # inv_wn, so the epilogue is just two O(tm*tn) broadcast multiplies.
        inv_x = 1.0 / (jnp.sqrt(xsq_ref[...]) + EPS)          # (tm, 1)
        o_ref[...] = (acc_ref[...] * inv_x * inv_wn_ref[...]).astype(o_ref.dtype)


def cos_linear(x: jax.Array, weight: jax.Array, *, use_bf16: bool = False) -> jax.Array:
    """Pallas implementation of cosLinear.forward.

    x:      [B, indim]       float32
    weight: [outdim, indim]  float32 (nn.Linear weight layout, bias=False)
    returns [B, outdim]      float32
    """
    B, indim = x.shape
    outdim, indim_w = weight.shape
    assert indim == indim_w

    # Hoisted, x-independent weight-row scale: (1/scale) / (||W_row|| + eps).
    w_norm = jnp.sqrt(jnp.sum(weight.astype(jnp.float32) ** 2, axis=1))
    inv_wn = ((1.0 / SCALE) / (w_norm + EPS)).reshape(1, outdim)

    # ---- tile selection & padding -------------------------------------
    # M (batch): full-dim block when small, else 256-row tiles (zero pad).
    if B <= _TM_PREF:
        tm, M_pad = B, B
    else:
        tm = _TM_PREF
        M_pad = _round_up(B, tm)

    # N (classes): pad to a multiple of 128 -> lane-dense unmasked stores.
    N_pad = _round_up(outdim, 128)
    tn = _TN_PREF if N_pad % _TN_PREF == 0 else 128

    # K (features): full-dim block when small, else 512 tiles (zero pad;
    # zero-padding K is exact for both the matmul and sum(x*x)).
    if indim <= _TK_PREF:
        tk, K_pad = indim, indim
    else:
        tk = _TK_PREF
        K_pad = _round_up(indim, tk)

    xp = x
    if (M_pad, K_pad) != (B, indim):
        xp = jnp.pad(x, ((0, M_pad - B), (0, K_pad - indim)))
    wp = weight
    if (N_pad, K_pad) != (outdim, indim):
        wp = jnp.pad(weight, ((0, N_pad - outdim), (0, K_pad - indim)))
    iwp = inv_wn
    if N_pad != outdim:
        iwp = jnp.pad(inv_wn, ((0, 0), (0, N_pad - outdim)))  # padded cols -> 0

    grid = (M_pad // tm, N_pad // tn, K_pad // tk)

    kernel = functools.partial(_cos_linear_kernel, use_bf16=use_bf16)

    out = pl.pallas_call(
        kernel,
        out_shape=jax.ShapeDtypeStruct((M_pad, N_pad), jnp.float32),
        grid_spec=pltpu.PrefetchScalarGridSpec(
            num_scalar_prefetch=0,
            grid=grid,
            in_specs=[
                pl.BlockSpec((tm, tk), lambda i, j, k: (i, k)),   # x tile
                pl.BlockSpec((tn, tk), lambda i, j, k: (j, k)),   # W tile (K last)
                pl.BlockSpec((1, tn), lambda i, j, k: (0, j)),    # inv_w_norm row
            ],
            out_specs=pl.BlockSpec((tm, tn), lambda i, j, k: (i, j)),
            scratch_shapes=[
                pltpu.VMEM((tm, tn), jnp.float32),  # matmul accumulator
                pltpu.VMEM((tm, 1), jnp.float32),   # sum(x*x) accumulator
            ],
        ),
        compiler_params=pltpu.CompilerParams(
            dimension_semantics=("parallel", "parallel", "arbitrary"),
            vmem_limit_bytes=32 * 1024 * 1024,
        ),
    )(xp, wp, iwp)

    return out[:B, :outdim]


def _reference(x, weight):
    # Pure-JAX mirror of the PyTorch forward, for a silent correctness check.
    x_norm = jnp.linalg.norm(x, axis=1, keepdims=True)
    x_n = x / (x_norm + EPS)
    w_norm = jnp.linalg.norm(weight, axis=1, keepdims=True)
    w_n = weight / (w_norm + EPS)
    return (x_n @ w_n.T) / SCALE


if __name__ == "__main__":
    # Module: cosLinear(indim, outdim) -> forward(x: [B, indim]) -> [B, outdim]
    B, indim, outdim = 8, 32, 16

    key = jax.random.PRNGKey(0)
    kx, kw = jax.random.split(key)

    x = jax.random.normal(kx, (B, indim), dtype=jnp.float32)
    # Deterministic synthetic weight for nn.Linear(indim, outdim, bias=False):
    # shape [outdim, indim], uniform(-1/sqrt(indim), 1/sqrt(indim)) like torch init.
    bound = 1.0 / (indim ** 0.5)
    weight = jax.random.uniform(
        kw, (outdim, indim), dtype=jnp.float32, minval=-bound, maxval=bound
    )

    out = cos_linear(x, weight)
    out = jax.block_until_ready(out)

    ref = _reference(x, weight)
    assert out.shape == (B, outdim)
    assert jnp.allclose(out, ref, atol=1e-4, rtol=1e-4), (
        float(jnp.max(jnp.abs(out - ref)))
    )

    print("KERNEL_OK")
</pallas_src>

<mosaic_0001>
module attributes {stable_mosaic.version = 11 : i64} {
  func.func @_cos_linear_kernel(%arg0: i32, %arg1: i32, %arg2: i32, %arg3: memref<8x32xf32, #tpu.memory_space<vmem>>, %arg4: memref<128x32xf32, #tpu.memory_space<vmem>>, %arg5: memref<1x128xf32, #tpu.memory_space<vmem>>, %arg6: memref<8x128xf32, #tpu.memory_space<vmem>>, %arg7: memref<8x128xf32, #tpu.memory_space<vmem>>, %arg8: memref<8x1xf32, #tpu.memory_space<vmem>>) attributes {dimension_semantics = [#tpu.dimension_semantics<parallel>, #tpu.dimension_semantics<parallel>, #tpu.dimension_semantics<arbitrary>], iteration_bounds = array<i64: 1, 1, 1>, scalar_prefetch = 0 : i64, scratch_operands = 2 : i64, tpu.core_type = #tpu.core_type<tc>, window_params = [{transform_indices = @transform_0, window_bounds = array<i64: 8, 32>}, {transform_indices = @transform_1, window_bounds = array<i64: 128, 32>}, {transform_indices = @transform_2, window_bounds = array<i64: 1, 128>}, {transform_indices = @transform_3, window_bounds = array<i64: 8, 128>}]} {
    %c0_i32 = arith.constant 0 : i32
    %0 = arith.cmpi eq, %arg2, %c0_i32 : i32
    %1 = arith.extui %0 : i1 to i32
    %c0_i32_0 = arith.constant 0 : i32
    %2 = arith.cmpi ne, %1, %c0_i32_0 : i32
    scf.if %2 {
      %cst_15 = arith.constant 0.000000e+00 : f32
      %18 = vector.broadcast %cst_15 : f32 to vector<8x128xf32>
      %c0_16 = arith.constant 0 : index
      %c0_17 = arith.constant 0 : index
      %19 = vector.load %arg7[%c0_16, %c0_17] : memref<8x128xf32, #tpu.memory_space<vmem>>, vector<8x128xf32>
      tpu.vector_store %arg7[%c0_16, %c0_17], %18 {strides = array<i32>} : memref<8x128xf32, #tpu.memory_space<vmem>>, vector<8x128xf32>,
      %cst_18 = arith.constant 0.000000e+00 : f32
      %20 = vector.broadcast %cst_18 : f32 to vector<8x1xf32>
      %c0_19 = arith.constant 0 : index
      %c0_20 = arith.constant 0 : index
      %21 = vector.load %arg8[%c0_19, %c0_20] : memref<8x1xf32, #tpu.memory_space<vmem>>, vector<8x1xf32>
      tpu.vector_store %arg8[%c0_19, %c0_20], %20 {strides = array<i32>} : memref<8x1xf32, #tpu.memory_space<vmem>>, vector<8x1xf32>,
    } else {
    }
    %c0 = arith.constant 0 : index
    %c0_1 = arith.constant 0 : index
    %3 = vector.load %arg3[%c0, %c0_1] : memref<8x32xf32, #tpu.memory_space<vmem>>, vector<8x32xf32>
    %c0_2 = arith.constant 0 : index
    %c0_3 = arith.constant 0 : index
    %4 = vector.load %arg4[%c0_2, %c0_3] : memref<128x32xf32, #tpu.memory_space<vmem>>, vector<128x32xf32>
    %c0_4 = arith.constant 0 : index
    %c0_5 = arith.constant 0 : index
    %5 = vector.load %arg8[%c0_4, %c0_5] : memref<8x1xf32, #tpu.memory_space<vmem>>, vector<8x1xf32>
    %6 = arith.mulf %3, %3 : vector<8x32xf32>
    %cst = arith.constant dense<0.000000e+00> : vector<8xf32>
    %7 = vector.multi_reduction <add>, %6, %cst [1] : vector<8x32xf32> to vector<8xf32>
    %8 = vector.shape_cast %7 : vector<8xf32> to vector<8x1xf32>
    %9 = arith.addf %5, %8 : vector<8x1xf32>
    %c0_6 = arith.constant 0 : index
    %c0_7 = arith.constant 0 : index
    %10 = vector.load %arg8[%c0_6, %c0_7] : memref<8x1xf32, #tpu.memory_space<vmem>>, vector<8x1xf32>
    tpu.vector_store %arg8[%c0_6, %c0_7], %9 {strides = array<i32>} : memref<8x1xf32, #tpu.memory_space<vmem>>, vector<8x1xf32>,
    %c0_8 = arith.constant 0 : index
    %c0_9 = arith.constant 0 : index
    %11 = vector.load %arg7[%c0_8, %c0_9] : memref<8x128xf32, #tpu.memory_space<vmem>>, vector<8x128xf32>
    %cst_10 = arith.constant dense<0.000000e+00> : vector<8x128xf32>
    %12 = tpu.matmul %3, %4, %cst_10 {dimension_numbers = #tpu.dot_dimension_numbers<[1], [1], [0], [0], [0, 0, 1, 0], [], []>} : vector<8x32xf32>, vector<128x32xf32>, vector<8x128xf32> -> vector<8x128xf32>
    %13 = arith.addf %11, %12 : vector<8x128xf32>
    %c0_11 = arith.constant 0 : index
    %c0_12 = arith.constant 0 : index
    %14 = vector.load %arg7[%c0_11, %c0_12] : memref<8x128xf32, #tpu.memory_space<vmem>>, vector<8x128xf32>
    tpu.vector_store %arg7[%c0_11, %c0_12], %13 {strides = array<i32>} : memref<8x128xf32, #tpu.memory_space<vmem>>, vector<8x128xf32>,
    %c0_i32_13 = arith.constant 0 : i32
    %15 = arith.cmpi eq, %arg2, %c0_i32_13 : i32
    %16 = arith.extui %15 : i1 to i32
    %c0_i32_14 = arith.constant 0 : i32
    %17 = arith.cmpi ne, %16, %c0_i32_14 : i32
    scf.if %17 {
      %c0_15 = arith.constant 0 : index
      %c0_16 = arith.constant 0 : index
      %18 = vector.load %arg8[%c0_15, %c0_16] : memref<8x1xf32, #tpu.memory_space<vmem>>, vector<8x1xf32>
      %19 = math.sqrt %18 : vector<8x1xf32>
      %cst_17 = arith.constant 9.99999997E-7 : f32
      %20 = vector.broadcast %cst_17 : f32 to vector<8x1xf32>
      %21 = arith.addf %19, %20 : vector<8x1xf32>
      %cst_18 = arith.constant 1.000000e+00 : f32
      %22 = vector.broadcast %cst_18 : f32 to vector<8x1xf32>
      %23 = arith.divf %22, %21 : vector<8x1xf32>
      %c0_19 = arith.constant 0 : index
      %c0_20 = arith.constant 0 : index
      %24 = vector.load %arg7[%c0_19, %c0_20] : memref<8x128xf32, #tpu.memory_space<vmem>>, vector<8x128xf32>
      %25 = vector.broadcast %23 : vector<8x1xf32> to vector<8x128xf32>
      %26 = arith.mulf %24, %25 : vector<8x128xf32>
      %c0_21 = arith.constant 0 : index
      %c0_22 = arith.constant 0 : index
      %27 = vector.load %arg5[%c0_21, %c0_22] : memref<1x128xf32, #tpu.memory_space<vmem>>, vector<1x128xf32>
      %28 = vector.broadcast %27 : vector<1x128xf32> to vector<8x128xf32>
      %29 = arith.mulf %26, %28 : vector<8x128xf32>
      %c0_23 = arith.constant 0 : index
      %c0_24 = arith.constant 0 : index
      %30 = vector.load %arg6[%c0_23, %c0_24] : memref<8x128xf32, #tpu.memory_space<vmem>>, vector<8x128xf32>
      tpu.vector_store %arg6[%c0_23, %c0_24], %29 {strides = array<i32>} : memref<8x128xf32, #tpu.memory_space<vmem>>, vector<8x128xf32>,
    } else {
    }
    return
  }
  func.func @transform_0(%arg0: i32, %arg1: i32, %arg2: i32) -> (i32, i32) {
    %c0_i32 = arith.constant 0 : i32
    return %arg0, %arg2 : i32, i32
  }
  func.func @transform_1(%arg0: i32, %arg1: i32, %arg2: i32) -> (i32, i32) {
    %c0_i32 = arith.constant 0 : i32
    return %arg1, %arg2 : i32, i32
  }
  func.func @transform_2(%arg0: i32, %arg1: i32, %arg2: i32) -> (i32, i32) {
    %c0_i32 = arith.constant 0 : i32
    %c0_i32_0 = arith.constant 0 : i32
    return %c0_i32, %arg1 : i32, i32
  }
  func.func @transform_3(%arg0: i32, %arg1: i32, %arg2: i32) -> (i32, i32) {
    %c0_i32 = arith.constant 0 : i32
    return %arg0, %arg1 : i32, i32
  }
}

</mosaic_0001>

<llo_original>
// kernel: tpu_custom_call.1
$region0: #{tpu_custom_call.1}
  #allocation0 [shape = 'u32[]', space=smem, size = 0x4, offset = 0x4, fixed_abs, tag = 'smem constant byte address 0x4 - core index']
  #allocation1 [shape = 'u32[144,128]{1,0:T(1,128)}', space=vmem, size = 0x12000, scoped, tag = 'internal scratch']
  #allocation2 [shape = 'f32[8,128]{1,0:T(8,128)}', space=vmem, size = 0x1000, scoped, tag = 'scratch operand']
  #allocation3 [shape = 'f32[8,1]{1,0:T(8,128)}', space=vmem, size = 0x1000, scoped, tag = 'scratch operand']
  %s0 = inlined_call_operand.vmem [shape: f32[8,32], index: 0, kind: input, shape index: {}]
  %s1 = inlined_call_operand.vmem [shape: f32[128,32], index: 1, kind: input, shape index: {}]
  %s2 = inlined_call_operand.vmem [shape: f32[1,128], index: 2, kind: input, shape index: {}]
  %s3 = inlined_call_operand.hbm [shape: f32[8,128], index: 3, kind: output, shape index: {}]
  %s4 = sld [smem:[#allocation0]]
  $region30: #{tpu_custom_call.1} parent=0
    _
  %s6 = ssub.s32 1, %s4
  %s7 = scalar_select 0, %s6, %s4
  $region1: #{tpu_custom_call.1} parent=0
    #allocation4 [shape = 'u8[4096]{0}', space=vmem, size = 0x1000, scoped, tag = 'output window, operand 0, single buffered']
    #allocation5 [shape = 's32[1]{0}', space=sflag, size = 0x4, scoped, tag = 'scoped memory for tpu_custom_call.1']
    %8 = vsyncpa [#allocation5], 0
    // Predicated region
    $region2: #{tpu_custom_call.1} parent=1 // pred_check
      _
    $region3: #{tpu_custom_call.1} parent=1 // pred_check_branch
      %10 = sbr.rel (0) target = $region5
    $region4: #{tpu_custom_call.1} parent=1 // pred_region
      _
    $region5: #{tpu_custom_call.1} parent=1 // pred_fallthru
      _
    // Predicated region
    $region6: #{tpu_custom_call.1} parent=1 // pred_check
      _
    $region7: #{tpu_custom_call.1} parent=1 // pred_check_branch
      %12 = sbr.rel (0) target = $region9
    $region8: #{tpu_custom_call.1} parent=1 // pred_region
      _
    $region9: #{tpu_custom_call.1} parent=1 // pred_fallthru
      _
    // Predicated region
    $region10: #{tpu_custom_call.1} parent=1 // pred_check
      _
    $region11: #{tpu_custom_call.1} parent=1 // pred_check_branch
      %14 = sbr.rel (0) target = $region13
    $region12: #{tpu_custom_call.1} parent=1 // pred_region
      _
    $region13: #{tpu_custom_call.1} parent=1 // pred_fallthru
      _
    %p15 = scmp.eq.s32.totalorder 0, 0
    // Predicated region
    $region14: #{tpu_custom_call.1} parent=1 // pred_check
      %p16 = pneg %p15
    $region15: #{tpu_custom_call.1} parent=1 // pred_check_branch
      %18 = sbr.rel (%p16) target = $region17
    $region16: #{tpu_custom_call.1} parent=1 // pred_region
      %19 = vst [vmem:[#allocation2] sm:$0xff] 0.0
      %vm20 = vcmask 7168
      %21 = vst.msk [vmem:[#allocation3] sm:$0xff] %vm20, 0.0
    $region17: #{tpu_custom_call.1} parent=1 // pred_fallthru
      _
    %v22 = vld [vmem:[%s0] sm:$0xff]
    %v23 = vld [vmem:[%s1] sm:$0xff]
    %v24 = vld [vmem:[%s1 + $0x8] sm:$0xff]
    %v25 = vld [vmem:[%s1 + $0x10] sm:$0xff]
    %v26 = vld [vmem:[%s1 + $0x18] sm:$0xff]
    %v27 = vld [vmem:[%s1 + $0x20] sm:$0xff]
    %v28 = vld [vmem:[%s1 + $0x28] sm:$0xff]
    %v29 = vld [vmem:[%s1 + $0x30] sm:$0xff]
    %v30 = vld [vmem:[%s1 + $0x38] sm:$0xff]
    %v31 = vld [vmem:[%s1 + $0x40] sm:$0xff]
    %v32 = vld [vmem:[%s1 + $0x48] sm:$0xff]
    %v33 = vld [vmem:[%s1 + $0x50] sm:$0xff]
    %v34 = vld [vmem:[%s1 + $0x58] sm:$0xff]
    %v35 = vld [vmem:[%s1 + $0x60] sm:$0xff]
    %v36 = vld [vmem:[%s1 + $0x68] sm:$0xff]
    %v37 = vld [vmem:[%s1 + $0x70] sm:$0xff]
    %v38 = vld [vmem:[%s1 + $0x78] sm:$0xff]
    %v39 = vld [vmem:[#allocation3] sm:$0xff]
    %v40 = vmul.f32 %v22, %v22
    %vm41 = vcmask 261120
    %v42 = vsel %vm41, %v40, 0.0
    %43 = vadd.xlane.f32.xlu0 %v42
    %v44 = vpop.xlane.xlu0 %43
    %v45 = vadd.f32 %v39, %v44
    %vm46 = vcmask 7168
    %47 = vst.msk [vmem:[#allocation3] sm:$0xff] %vm46, %v45
    %v48 = vld [vmem:[#allocation2] sm:$0xff]
    %v50 = vsel %vm41, %v22, 0
    %v53 = vsel %vm41, %v23, 0
    %v56 = vsel %vm41, %v24, 0
    %v59 = vsel %vm41, %v25, 0
    %v62 = vsel %vm41, %v26, 0
    %v65 = vsel %vm41, %v27, 0
    %v68 = vsel %vm41, %v28, 0
    %v71 = vsel %vm41, %v29, 0
    %v74 = vsel %vm41, %v30, 0
    %v77 = vsel %vm41, %v31, 0
    %v80 = vsel %vm41, %v32, 0
    %v83 = vsel %vm41, %v33, 0
    %v86 = vsel %vm41, %v34, 0
    %v89 = vsel %vm41, %v35, 0
    %v92 = vsel %vm41, %v36, 0
    %v95 = vsel %vm41, %v37, 0
    %v98 = vsel %vm41, %v38, 0
    %100 = vmatprep.subr.mxu0 0.0
    %101 = vmatpush1.xpose.msra.mxu0 %v98
    %102 = vmatprep.subr.mxu0 0.0
    %103 = vmatpush1.xpose.msra.mxu0 %v95
    %104 = vmatprep.subr.mxu0 0.0
    %105 = vmatpush1.xpose.msra.mxu0 %v92
    %106 = vmatprep.subr.mxu0 0.0
    %107 = vmatpush1.xpose.msra.mxu0 %v89
    %108 = vmatprep.subr.mxu0 0.0
    %109 = vmatpush1.xpose.msra.mxu0 %v86
    %110 = vmatprep.subr.mxu0 0.0
    %111 = vmatpush1.xpose.msra.mxu0 %v83
    %112 = vmatprep.subr.mxu0 0.0
    %113 = vmatpush1.xpose.msra.mxu0 %v80
    %114 = vmatprep.subr.mxu0 0.0
    %115 = vmatpush1.xpose.msra.mxu0 %v77
    %116 = vmatprep.subr.mxu0 0.0
    %117 = vmatpush1.xpose.msra.mxu0 %v74
    %118 = vmatprep.subr.mxu0 0.0
    %119 = vmatpush1.xpose.msra.mxu0 %v71
    %120 = vmatprep.subr.mxu0 0.0
    %121 = vmatpush1.xpose.msra.mxu0 %v68
    %122 = vmatprep.subr.mxu0 0.0
    %123 = vmatpush1.xpose.msra.mxu0 %v65
    %124 = vmatprep.subr.mxu0 0.0
    %125 = vmatpush1.xpose.msra.mxu0 %v62
    %126 = vmatprep.subr.mxu0 0.0
    %127 = vmatpush1.xpose.msra.mxu0 %v59
    %128 = vmatprep.subr.mxu0 0.0
    %129 = vmatpush1.xpose.msra.mxu0 %v56
    %130 = vmatprep.subr.mxu0 0.0
    %131 = vmatpush1.xpose.msra.mxu0 %v53
    %132 = vmatprep.subr.mxu0 0.0
    %133 = vmatpush2.xpose.msra.mxu0 0.0
    %134 = vmatprep.subr.mxu0 0.0
    %135 = vmatpush2.xpose.msra.mxu0 0.0
    %136 = vmatprep.subr.mxu0 0.0
    %137 = vmatpush2.xpose.msra.mxu0 0.0
    %138 = vmatprep.subr.mxu0 0.0
    %139 = vmatpush2.xpose.msra.mxu0 0.0
    %140 = vmatprep.subr.mxu0 0.0
    %141 = vmatpush2.xpose.msra.mxu0 0.0
    %142 = vmatprep.subr.mxu0 0.0
    %143 = vmatpush2.xpose.msra.mxu0 0.0
    %144 = vmatprep.subr.mxu0 0.0
    %145 = vmatpush2.xpose.msra.mxu0 0.0
    %146 = vmatprep.subr.mxu0 0.0
    %147 = vmatpush2.xpose.msra.mxu0 0.0
    %148 = vmatprep.subr.mxu0 0.0
    %149 = vmatpush2.xpose.msra.mxu0 0.0
    %150 = vmatprep.subr.mxu0 0.0
    %151 = vmatpush2.xpose.msra.mxu0 0.0
    %152 = vmatprep.subr.mxu0 0.0
    %153 = vmatpush2.xpose.msra.mxu0 0.0
    %154 = vmatprep.subr.mxu0 0.0
    %155 = vmatpush2.xpose.msra.mxu0 0.0
    %156 = vmatprep.subr.mxu0 0.0
    %157 = vmatpush2.xpose.msra.mxu0 0.0
    %158 = vmatprep.subr.mxu0 0.0
    %159 = vmatpush2.xpose.msra.mxu0 0.0
    %160 = vmatprep.subr.mxu0 0.0
    %161 = vmatpush2.xpose.msra.mxu0 0.0
    %162 = vmatprep.subr.mxu0 0.0
    %163 = vmatpush2.xpose.msra.mxu0 0.0
    %164 = vmatprep.mubr.f32.mxu0 0.0
    %165 = vmatmul.mubr.f32.gmra.mxu0 %v50
    %v166 = vpop.f32.mrf.mxu0
    %v167 = vadd.f32 0.0, %v166
    %v168 = vpop.f32.mrf.mxu0
    %169 = vdwg.mxu0
    %v170 = vadd.f32 %v48, %v167
    %171 = vst [vmem:[#allocation2] sm:$0xff] %v170
    // Predicated region
    $region18: #{tpu_custom_call.1} parent=1 // pred_check
      %p172 = pneg %p15
    $region19: #{tpu_custom_call.1} parent=1 // pred_check_branch
      %174 = sbr.rel (%p172) target = $region21
    $region20: #{tpu_custom_call.1} parent=1 // pred_region
      %v175 = vld [vmem:[#allocation3] sm:$0xff]
      %v176 = vrsqrt.pop %v175
      %v177 = vmul.f32 %v175, %v176
      %vm178 = vcmp.eq.f32.partialorder %v175, inf
      %v179 = vsel %vm178, %v175, %v177
      %vm180 = vcmp.eq.f32.partialorder %v175, 0.0
      %v181 = vand.u32 %v175, 2147483648
      %v182 = vsel %vm180, %v181, %v179
      %v183 = vadd.f32 %v182, 1e-06
      %v184 = vrcp.pop %v183
      %v185 = vmul.f32 1.0, %v184
      %v186 = vld [vmem:[#allocation2] sm:$0xff]
      %188 = vset.pattern.permute.xlu0 0
      %189 = vperm.xlu0 %188, %v185
      %v190 = vpop.permute.xlu0 %189
      %v192 = vmul.f32 %v186, %v190
      %v193 = vld [vmem:[%s2] sm:$0x1]
      %v195 = vlaneseq
      %v196 = vshrl.u32 %v195, 7
      %v197 = vsub.s32 0, %v196
      %v198 = vrot.slane %v193, %v197
      %v200 = vmul.f32 %v192, %v198
      %201 = vst [vmem:[#allocation4] sm:$0xff] %v200
    $region21: #{tpu_custom_call.1} parent=1 // pred_fallthru
      _
    // Predicated region
    $region22: #{tpu_custom_call.1} parent=1 // pred_check
      _
    $region23: #{tpu_custom_call.1} parent=1 // pred_check_branch
      %203 = sbr.rel (0) target = $region25
    $region24: #{tpu_custom_call.1} parent=1 // pred_region
      %s205 = ssub.s32 128, 128
      %206 = vsyncadd [#allocation5], %s205
      %s208 = sshll.u32 [#allocation4], 4
      %s209 = int_to_ptr.vmem [resolvable:$true] %s208
      %211 = dma.vmem_to_hbm [thread:$0]  %s209, 128, %s3, [#allocation5]
    $region25: #{tpu_custom_call.1} parent=1 // pred_fallthru
      _
    // Predicated region
    $region26: #{tpu_custom_call.1} parent=1 // pred_check
      _
    $region27: #{tpu_custom_call.1} parent=1 // pred_check_branch
      %213 = sbr.rel (0) target = $region29
    $region28: #{tpu_custom_call.1} parent=1 // pred_region
      %214 = dma.done [#allocation5], 128
    $region29: #{tpu_custom_call.1} parent=1 // pred_fallthru
      _
    %215 = vsyncpa [#allocation5], 1

</llo_original>
